<compile_context>
chip_gen: v7x
topology: tpu7x:2x2x1
jax: 0.10.0
libtpu: 0.0.40
codegen_flags: <defaults>
</compile_context>

<pallas_src>
import functools

import jax
import jax.numpy as jnp
from jax.experimental import pallas as pl
from jax.experimental.pallas import tpu as pltpu

EPS = 1e-5  # nn.BatchNorm2d default eps


def _pick_tile_h(h, w_sp):
    """Largest divisor of h such that tile_h * w_sp <= ~4096 rows per matmul."""
    target = max(1, 4096 // max(w_sp, 1))
    best = 1
    for d in range(1, h + 1):
        if h % d == 0 and d <= target:
            best = d
    return best


def _upconv_phase_kernel(xp_ref, wk_ref, *out_refs, tile_h, w_sp, cout, outermost):
    # xp_ref : (1, H+2, W+2, Cin)     padded input for batch n, compute dtype
    # wk_ref : (2, 2, 4*Cin, Cout)    per-phase fused-tap weights, compute dtype
    # out[0] : (1, tile_h, W, 4*Cout) f32 phase-packed conv output (tanh if outermost)
    # out[1] : (1, 1, 2, 4*Cout)      f32 per-tile (sum, sumsq)  [only if not outermost]
    y_ref = out_refs[0]
    t = pl.program_id(1)
    cin = xp_ref.shape[-1]

    # rows [t*tile_h, t*tile_h + tile_h + 2) of the padded input (halo of 2).
    row0 = pl.multiple_of(t * tile_h, tile_h)
    xp = xp_ref[0, pl.ds(row0, tile_h + 2), :, :]          # (tile_h+2, W+2, Cin)

    accs = []
    for ph in range(2):
        for pw in range(2):
            # fuse the 2x2 taps of this phase along K -> one MXU matmul
            patches = []
            for dh in range(2):
                for dw in range(2):
                    patches.append(
                        xp[ph + dh:ph + dh + tile_h,
                           pw + dw:pw + dw + w_sp, :].reshape(tile_h * w_sp, cin))
            lhs = jnp.concatenate(patches, axis=-1)        # (tile_h*W, 4*Cin)
            accs.append(jnp.dot(lhs, wk_ref[ph, pw],
                                preferred_element_type=jnp.float32))

    packed = jnp.concatenate(accs, axis=-1)                # (tile_h*W, 4*Cout)

    if outermost:
        # outermost path: upconv -> tanh (no norm / relu, bias is False here).
        y_ref[0] = jnp.tanh(packed).reshape(tile_h, w_sp, 4 * cout)
        return

    y_ref[0] = packed.reshape(tile_h, w_sp, 4 * cout)
    stats_ref = out_refs[1]
    s = jnp.sum(packed, axis=0, keepdims=True)             # (1, 4*Cout)
    ss = jnp.sum(packed * packed, axis=0, keepdims=True)   # (1, 4*Cout)
    stats_ref[0, 0] = jnp.concatenate([s, ss], axis=0)     # (2, 4*Cout)


def _bn_relu_kernel(y_ref, scale_ref, shift_ref, o_ref):
    # y_ref/o_ref: (1, tile_h, W, 4*Cout) f32; scale/shift: (1, 4*Cout) f32.
    sc = scale_ref[...].reshape(1, 1, 1, -1)
    sh = shift_ref[...].reshape(1, 1, 1, -1)
    o_ref[...] = jnp.maximum(y_ref[...] * sc + sh, 0.0)


def unet_right_block(x_nchw, weight, gamma, beta, *, outermost=False,
                     compute_dtype=jnp.bfloat16):
    """x_nchw: (N, Cin, H, W) f32.  weight: (Cin, Cout, 4, 4) (PyTorch ConvTranspose2d).
    gamma, beta: (Cout,) BatchNorm2d affine params.  Returns (N, Cout, 2H, 2W) f32."""
    n, cin, h, w_sp = x_nchw.shape
    cout = weight.shape[1]
    ho, wo = 2 * h, 2 * w_sp
    tile_h = _pick_tile_h(h, w_sp)
    n_t = h // tile_h

    # NHWC input, padded by 1 on each spatial side (all the phase conv needs).
    # NOTE: small Cin pays 128-lane padding in VMEM for the input block; the
    # fused-tap LHS (K = 4*Cin) partially recovers MXU K utilization.
    x = jnp.transpose(x_nchw, (0, 2, 3, 1)).astype(jnp.float32)
    xp = jnp.pad(x, ((0, 0), (1, 1), (1, 1), (0, 0))).astype(compute_dtype)

    # Per-phase fused-tap weights:
    #   wk[ph, pw, (dh*2+dw)*Cin + ci, co] = W[ci, co, 3 - ph - 2*dh, 3 - pw - 2*dw]
    wf = weight.astype(jnp.float32)
    phase_blocks = []
    for ph in range(2):
        row = []
        for pw in range(2):
            taps = [wf[:, :, 3 - ph - 2 * dh, 3 - pw - 2 * dw]
                    for dh in range(2) for dw in range(2)]      # each (Cin, Cout)
            row.append(jnp.concatenate(taps, axis=0))           # (4*Cin, Cout)
        phase_blocks.append(jnp.stack(row, axis=0))             # (2, 4*Cin, Cout)
    wk = jnp.stack(phase_blocks, axis=0).astype(compute_dtype)  # (2, 2, 4*Cin, Cout)

    # explicit VMEM limit derived from block sizes (headroom, capped < v7x 64 MiB).
    isz = jnp.dtype(compute_dtype).itemsize
    xp_bytes = (h + 2) * (w_sp + 2) * cin * isz
    wk_bytes = 16 * cin * cout * isz
    y_blk_bytes = tile_h * w_sp * 4 * cout * 4
    est = 2 * (xp_bytes + y_blk_bytes + 2 * 4 * cout * 4) + wk_bytes
    vmem_limit = int(min(max(3 * est + (8 << 20), 32 << 20), 56 << 20))

    conv_kernel = functools.partial(_upconv_phase_kernel, tile_h=tile_h,
                                    w_sp=w_sp, cout=cout, outermost=outermost)

    y_spec = pl.BlockSpec((1, tile_h, w_sp, 4 * cout), lambda i, t: (i, t, 0, 0))
    y_shape = jax.ShapeDtypeStruct((n, h, w_sp, 4 * cout), jnp.float32)
    if outermost:
        out_shape = y_shape
        out_specs = y_spec
    else:
        out_shape = (y_shape,
                     jax.ShapeDtypeStruct((n, n_t, 2, 4 * cout), jnp.float32))
        out_specs = [y_spec,
                     pl.BlockSpec((1, 1, 2, 4 * cout), lambda i, t: (i, t, 0, 0))]

    conv_out = pl.pallas_call(
        conv_kernel,
        out_shape=out_shape,
        grid_spec=pltpu.PrefetchScalarGridSpec(
            num_scalar_prefetch=0,
            grid=(n, n_t),
            in_specs=[
                pl.BlockSpec((1, h + 2, w_sp + 2, cin), lambda i, t: (i, 0, 0, 0)),
                pl.BlockSpec((2, 2, 4 * cin, cout), lambda i, t: (0, 0, 0, 0)),
            ],
            out_specs=out_specs,
        ),
        compiler_params=pltpu.CompilerParams(
            dimension_semantics=("parallel", "parallel"),
            vmem_limit_bytes=vmem_limit),
    )(xp, wk)

    if outermost:
        y_packed = conv_out
    else:
        y_packed, stats = conv_out
        # tiny cross-tile reduction + mean/var in plain JAX (training-mode BN stats).
        count = jnp.float32(n * ho * wo)
        ssum = stats[:, :, 0, :].sum(axis=(0, 1)).reshape(4, cout).sum(axis=0)
        ssq = stats[:, :, 1, :].sum(axis=(0, 1)).reshape(4, cout).sum(axis=0)
        mean = ssum / count
        var = jnp.maximum(ssq / count - mean * mean, 0.0)      # biased variance
        inv = jax.lax.rsqrt(var + EPS)
        scale_c = gamma.astype(jnp.float32) * inv              # (Cout,)
        shift_c = beta.astype(jnp.float32) - mean * scale_c
        scale4 = jnp.tile(scale_c, 4).reshape(1, 4 * cout)     # match (ph,pw,co) packing
        shift4 = jnp.tile(shift_c, 4).reshape(1, 4 * cout)

        y_packed = pl.pallas_call(
            _bn_relu_kernel,
            out_shape=jax.ShapeDtypeStruct((n, h, w_sp, 4 * cout), jnp.float32),
            grid_spec=pltpu.PrefetchScalarGridSpec(
                num_scalar_prefetch=0,
                grid=(n, n_t),
                in_specs=[
                    pl.BlockSpec((1, tile_h, w_sp, 4 * cout),
                                 lambda i, t: (i, t, 0, 0)),
                    pl.BlockSpec((1, 4 * cout), lambda i, t: (0, 0)),
                    pl.BlockSpec((1, 4 * cout), lambda i, t: (0, 0)),
                ],
                out_specs=pl.BlockSpec((1, tile_h, w_sp, 4 * cout),
                                       lambda i, t: (i, t, 0, 0)),
            ),
            compiler_params=pltpu.CompilerParams(
                dimension_semantics=("parallel", "parallel"),
                vmem_limit_bytes=vmem_limit),
        )(y_packed, scale4, shift4)

    # depth-to-space: packed (N, H, W, ph, pw, Cout) -> (N, Cout, 2H, 2W)
    y6 = y_packed.reshape(n, h, w_sp, 2, 2, cout)
    return jnp.transpose(y6, (0, 5, 1, 3, 2, 4)).reshape(n, cout, ho, wo)


def _reference(x_nchw, weight, gamma, beta, *, outermost, compute_dtype=jnp.float32):
    """Pure-JAX reference of UnetRightBlock.forward (training-mode BN).
    compute_dtype controls the rounding applied to x / weight before the conv so
    the bf16 fast path can be checked tightly."""
    n, cin, h, w = x_nchw.shape
    cout = weight.shape[1]
    x = jnp.transpose(x_nchw, (0, 2, 3, 1)).astype(compute_dtype).astype(jnp.float32)
    wt = weight.astype(compute_dtype).astype(jnp.float32)
    xd = jnp.zeros((n, 2 * h - 1, 2 * w - 1, cin), jnp.float32)
    xd = xd.at[:, ::2, ::2, :].set(x)
    xpad = jnp.pad(xd, ((0, 0), (2, 2), (2, 2), (0, 0)))
    wf = jnp.transpose(wt, (2, 3, 0, 1))[::-1, ::-1, :, :]
    y = jnp.zeros((n, 2 * h, 2 * w, cout), jnp.float32)
    for kh in range(4):
        for kw in range(4):
            y = y + jnp.einsum('nhwc,cd->nhwd',
                               xpad[:, kh:kh + 2 * h, kw:kw + 2 * w, :], wf[kh, kw])
    if outermost:
        out = jnp.tanh(y)
    else:
        mean = y.mean(axis=(0, 1, 2))
        var = y.var(axis=(0, 1, 2))
        out = jnp.maximum((y - mean) * gamma / jnp.sqrt(var + EPS) + beta, 0.0)
    return jnp.transpose(out, (0, 3, 1, 2))


if __name__ == "__main__":
    key = jax.random.PRNGKey(0)
    k1, k2, k3, k4 = jax.random.split(key, 4)

    N, Cin, Cout, H, W = 2, 8, 8, 8, 8
    x = jax.random.normal(k1, (N, Cin, H, W), jnp.float32)
    # ConvTranspose2d weight layout: (in_channels, out_channels, kH, kW)
    weight = 0.1 * jax.random.normal(k2, (Cin, Cout, 4, 4), jnp.float32)
    gamma = 1.0 + 0.1 * jax.random.normal(k3, (Cout,), jnp.float32)
    beta = 0.1 * jax.random.normal(k4, (Cout,), jnp.float32)

    # default path (upconv -> batchnorm -> relu), bf16 matmul inputs.
    out = jax.block_until_ready(unet_right_block(x, weight, gamma, beta,
                                                 outermost=False))
    assert out.shape == (N, Cout, 2 * H, 2 * W)
    ref_matched = _reference(x, weight, gamma, beta, outermost=False,
                             compute_dtype=jnp.bfloat16)
    assert jnp.allclose(out, ref_matched, atol=1e-3, rtol=1e-3), \
        "non-outermost mismatch (bf16-matched reference)"
    ref_f32 = _reference(x, weight, gamma, beta, outermost=False,
                         compute_dtype=jnp.float32)
    assert jnp.allclose(out, ref_f32, atol=5e-2, rtol=5e-2), \
        "non-outermost mismatch (f32 module semantics)"

    # outermost path (upconv -> tanh).
    out2 = jax.block_until_ready(unet_right_block(x, weight, gamma, beta,
                                                  outermost=True))
    ref2 = _reference(x, weight, gamma, beta, outermost=True,
                      compute_dtype=jnp.bfloat16)
    assert jnp.allclose(out2, ref2, atol=1e-3, rtol=1e-3), "outermost mismatch"

    print("KERNEL_OK")
</pallas_src>

<mosaic_0001>
module attributes {stable_mosaic.version = 11 : i64} {
  func.func @_upconv_phase_kernel(%arg0: i32, %arg1: i32, %arg2: memref<1x10x10x8xbf16, #tpu.memory_space<vmem>>, %arg3: memref<2x2x32x8xbf16, #tpu.memory_space<vmem>>, %arg4: memref<1x8x8x32xf32, #tpu.memory_space<vmem>>, %arg5: memref<1x1x2x32xf32, #tpu.memory_space<vmem>>) attributes {dimension_semantics = [#tpu.dimension_semantics<parallel>, #tpu.dimension_semantics<parallel>], iteration_bounds = array<i64: 2, 1>, scalar_prefetch = 0 : i64, scratch_operands = 0 : i64, tpu.core_type = #tpu.core_type<tc>, window_params = [{transform_indices = @transform_0, window_bounds = array<i64: 1, 10, 10, 8>}, {pipeline_mode = #tpu.pipeline_mode<synchronous>, transform_indices = @transform_1, window_bounds = array<i64: 2, 2, 32, 8>}, {transform_indices = @transform_2, window_bounds = array<i64: 1, 8, 8, 32>}, {transform_indices = @transform_3, window_bounds = array<i64: 1, 1, 2, 32>}]} {
    %c8_i32 = arith.constant 8 : i32
    %0 = arith.muli %arg1, %c8_i32 : i32
    %1 = tpu.assume_multiple %0, 8 : i32
    %c0 = arith.constant 0 : index
    %2 = arith.index_cast %1 : i32 to index
    %c0_0 = arith.constant 0 : index
    %c0_1 = arith.constant 0 : index
    %3 = vector.load %arg2[%c0, %2, %c0_0, %c0_1] : memref<1x10x10x8xbf16, #tpu.memory_space<vmem>>, vector<1x10x10x8xbf16>
    %4 = vector.shape_cast %3 : vector<1x10x10x8xbf16> to vector<10x10x8xbf16>
    %5 = vector.extract_strided_slice %4 {offsets = [0, 0, 0], sizes = [8, 8, 8], strides = [1, 1, 1]} : vector<10x10x8xbf16> to vector<8x8x8xbf16>
    %6 = vector.shape_cast %5 : vector<8x8x8xbf16> to vector<64x8xbf16>
    %7 = vector.extract_strided_slice %4 {offsets = [0, 1, 0], sizes = [8, 8, 8], strides = [1, 1, 1]} : vector<10x10x8xbf16> to vector<8x8x8xbf16>
    %8 = vector.shape_cast %7 : vector<8x8x8xbf16> to vector<64x8xbf16>
    %9 = vector.extract_strided_slice %4 {offsets = [1, 0, 0], sizes = [8, 8, 8], strides = [1, 1, 1]} : vector<10x10x8xbf16> to vector<8x8x8xbf16>
    %10 = vector.shape_cast %9 : vector<8x8x8xbf16> to vector<64x8xbf16>
    %11 = vector.extract_strided_slice %4 {offsets = [1, 1, 0], sizes = [8, 8, 8], strides = [1, 1, 1]} : vector<10x10x8xbf16> to vector<8x8x8xbf16>
    %12 = vector.shape_cast %11 : vector<8x8x8xbf16> to vector<64x8xbf16>
    %13 = tpu.concatenate %6, %8, %10, %12 in 1 : vector<64x8xbf16>, vector<64x8xbf16>, vector<64x8xbf16>, vector<64x8xbf16> -> vector<64x32xbf16>
    %c0_2 = arith.constant 0 : index
    %c0_3 = arith.constant 0 : index
    %c0_4 = arith.constant 0 : index
    %c0_5 = arith.constant 0 : index
    %14 = vector.load %arg3[%c0_2, %c0_3, %c0_4, %c0_5] : memref<2x2x32x8xbf16, #tpu.memory_space<vmem>>, vector<1x1x32x8xbf16>
    %15 = vector.shape_cast %14 : vector<1x1x32x8xbf16> to vector<32x8xbf16>
    %cst = arith.constant dense<0.000000e+00> : vector<64x8xf32>
    %16 = tpu.matmul %13, %15, %cst {dimension_numbers = #tpu.dot_dimension_numbers<[1], [0], [0], [1], [0, 0, 1, 1], [], []>} : vector<64x32xbf16>, vector<32x8xbf16>, vector<64x8xf32> -> vector<64x8xf32>
    %17 = vector.extract_strided_slice %4 {offsets = [0, 1, 0], sizes = [8, 8, 8], strides = [1, 1, 1]} : vector<10x10x8xbf16> to vector<8x8x8xbf16>
    %18 = vector.shape_cast %17 : vector<8x8x8xbf16> to vector<64x8xbf16>
    %19 = vector.extract_strided_slice %4 {offsets = [0, 2, 0], sizes = [8, 8, 8], strides = [1, 1, 1]} : vector<10x10x8xbf16> to vector<8x8x8xbf16>
    %20 = vector.shape_cast %19 : vector<8x8x8xbf16> to vector<64x8xbf16>
    %21 = vector.extract_strided_slice %4 {offsets = [1, 1, 0], sizes = [8, 8, 8], strides = [1, 1, 1]} : vector<10x10x8xbf16> to vector<8x8x8xbf16>
    %22 = vector.shape_cast %21 : vector<8x8x8xbf16> to vector<64x8xbf16>
    %23 = vector.extract_strided_slice %4 {offsets = [1, 2, 0], sizes = [8, 8, 8], strides = [1, 1, 1]} : vector<10x10x8xbf16> to vector<8x8x8xbf16>
    %24 = vector.shape_cast %23 : vector<8x8x8xbf16> to vector<64x8xbf16>
    %25 = tpu.concatenate %18, %20, %22, %24 in 1 : vector<64x8xbf16>, vector<64x8xbf16>, vector<64x8xbf16>, vector<64x8xbf16> -> vector<64x32xbf16>
    %c0_6 = arith.constant 0 : index
    %c1 = arith.constant 1 : index
    %c0_7 = arith.constant 0 : index
    %c0_8 = arith.constant 0 : index
    %26 = vector.load %arg3[%c0_6, %c1, %c0_7, %c0_8] : memref<2x2x32x8xbf16, #tpu.memory_space<vmem>>, vector<1x1x32x8xbf16>
    %27 = vector.shape_cast %26 : vector<1x1x32x8xbf16> to vector<32x8xbf16>
    %cst_9 = arith.constant dense<0.000000e+00> : vector<64x8xf32>
    %28 = tpu.matmul %25, %27, %cst_9 {dimension_numbers = #tpu.dot_dimension_numbers<[1], [0], [0], [1], [0, 0, 1, 1], [], []>} : vector<64x32xbf16>, vector<32x8xbf16>, vector<64x8xf32> -> vector<64x8xf32>
    %29 = vector.extract_strided_slice %4 {offsets = [1, 0, 0], sizes = [8, 8, 8], strides = [1, 1, 1]} : vector<10x10x8xbf16> to vector<8x8x8xbf16>
    %30 = vector.shape_cast %29 : vector<8x8x8xbf16> to vector<64x8xbf16>
    %31 = vector.extract_strided_slice %4 {offsets = [1, 1, 0], sizes = [8, 8, 8], strides = [1, 1, 1]} : vector<10x10x8xbf16> to vector<8x8x8xbf16>
    %32 = vector.shape_cast %31 : vector<8x8x8xbf16> to vector<64x8xbf16>
    %33 = vector.extract_strided_slice %4 {offsets = [2, 0, 0], sizes = [8, 8, 8], strides = [1, 1, 1]} : vector<10x10x8xbf16> to vector<8x8x8xbf16>
    %34 = vector.shape_cast %33 : vector<8x8x8xbf16> to vector<64x8xbf16>
    %35 = vector.extract_strided_slice %4 {offsets = [2, 1, 0], sizes = [8, 8, 8], strides = [1, 1, 1]} : vector<10x10x8xbf16> to vector<8x8x8xbf16>
    %36 = vector.shape_cast %35 : vector<8x8x8xbf16> to vector<64x8xbf16>
    %37 = tpu.concatenate %30, %32, %34, %36 in 1 : vector<64x8xbf16>, vector<64x8xbf16>, vector<64x8xbf16>, vector<64x8xbf16> -> vector<64x32xbf16>
    %c1_10 = arith.constant 1 : index
    %c0_11 = arith.constant 0 : index
    %c0_12 = arith.constant 0 : index
    %c0_13 = arith.constant 0 : index
    %38 = vector.load %arg3[%c1_10, %c0_11, %c0_12, %c0_13] : memref<2x2x32x8xbf16, #tpu.memory_space<vmem>>, vector<1x1x32x8xbf16>
    %39 = vector.shape_cast %38 : vector<1x1x32x8xbf16> to vector<32x8xbf16>
    %cst_14 = arith.constant dense<0.000000e+00> : vector<64x8xf32>
    %40 = tpu.matmul %37, %39, %cst_14 {dimension_numbers = #tpu.dot_dimension_numbers<[1], [0], [0], [1], [0, 0, 1, 1], [], []>} : vector<64x32xbf16>, vector<32x8xbf16>, vector<64x8xf32> -> vector<64x8xf32>
    %41 = vector.extract_strided_slice %4 {offsets = [1, 1, 0], sizes = [8, 8, 8], strides = [1, 1, 1]} : vector<10x10x8xbf16> to vector<8x8x8xbf16>
    %42 = vector.shape_cast %41 : vector<8x8x8xbf16> to vector<64x8xbf16>
    %43 = vector.extract_strided_slice %4 {offsets = [1, 2, 0], sizes = [8, 8, 8], strides = [1, 1, 1]} : vector<10x10x8xbf16> to vector<8x8x8xbf16>
    %44 = vector.shape_cast %43 : vector<8x8x8xbf16> to vector<64x8xbf16>
    %45 = vector.extract_strided_slice %4 {offsets = [2, 1, 0], sizes = [8, 8, 8], strides = [1, 1, 1]} : vector<10x10x8xbf16> to vector<8x8x8xbf16>
    %46 = vector.shape_cast %45 : vector<8x8x8xbf16> to vector<64x8xbf16>
    %47 = vector.extract_strided_slice %4 {offsets = [2, 2, 0], sizes = [8, 8, 8], strides = [1, 1, 1]} : vector<10x10x8xbf16> to vector<8x8x8xbf16>
    %48 = vector.shape_cast %47 : vector<8x8x8xbf16> to vector<64x8xbf16>
    %49 = tpu.concatenate %42, %44, %46, %48 in 1 : vector<64x8xbf16>, vector<64x8xbf16>, vector<64x8xbf16>, vector<64x8xbf16> -> vector<64x32xbf16>
    %c1_15 = arith.constant 1 : index
    %c1_16 = arith.constant 1 : index
    %c0_17 = arith.constant 0 : index
    %c0_18 = arith.constant 0 : index
    %50 = vector.load %arg3[%c1_15, %c1_16, %c0_17, %c0_18] : memref<2x2x32x8xbf16, #tpu.memory_space<vmem>>, vector<1x1x32x8xbf16>
    %51 = vector.shape_cast %50 : vector<1x1x32x8xbf16> to vector<32x8xbf16>
    %cst_19 = arith.constant dense<0.000000e+00> : vector<64x8xf32>
    %52 = tpu.matmul %49, %51, %cst_19 {dimension_numbers = #tpu.dot_dimension_numbers<[1], [0], [0], [1], [0, 0, 1, 1], [], []>} : vector<64x32xbf16>, vector<32x8xbf16>, vector<64x8xf32> -> vector<64x8xf32>
    %53 = tpu.concatenate %16, %28, %40, %52 in 1 : vector<64x8xf32>, vector<64x8xf32>, vector<64x8xf32>, vector<64x8xf32> -> vector<64x32xf32>
    %54 = vector.shape_cast %53 : vector<64x32xf32> to vector<8x8x32xf32>
    %c0_20 = arith.constant 0 : index
    %c0_21 = arith.constant 0 : index
    %c0_22 = arith.constant 0 : index
    %c0_23 = arith.constant 0 : index
    %55 = vector.load %arg4[%c0_20, %c0_21, %c0_22, %c0_23] : memref<1x8x8x32xf32, #tpu.memory_space<vmem>>, vector<1x8x8x32xf32>
    %56 = vector.shape_cast %55 : vector<1x8x8x32xf32> to vector<8x8x32xf32>
    %57 = vector.shape_cast %54 : vector<8x8x32xf32> to vector<1x8x8x32xf32>
    tpu.vector_store %arg4[%c0_20, %c0_21, %c0_22, %c0_23], %57 {strides = array<i32>} : memref<1x8x8x32xf32, #tpu.memory_space<vmem>>, vector<1x8x8x32xf32>,
    %cst_24 = arith.constant dense<0.000000e+00> : vector<32xf32>
    %58 = vector.multi_reduction <add>, %53, %cst_24 [0] : vector<64x32xf32> to vector<32xf32>
    %59 = vector.shape_cast %58 : vector<32xf32> to vector<1x32xf32>
    %60 = arith.mulf %53, %53 : vector<64x32xf32>
    %cst_25 = arith.constant dense<0.000000e+00> : vector<32xf32>
    %61 = vector.multi_reduction <add>, %60, %cst_25 [0] : vector<64x32xf32> to vector<32xf32>
    %62 = vector.shape_cast %61 : vector<32xf32> to vector<1x32xf32>
    %63 = tpu.concatenate %59, %62 in 0 : vector<1x32xf32>, vector<1x32xf32> -> vector<2x32xf32>
    %c0_26 = arith.constant 0 : index
    %c0_27 = arith.constant 0 : index
    %c0_28 = arith.constant 0 : index
    %c0_29 = arith.constant 0 : index
    %64 = vector.load %arg5[%c0_26, %c0_27, %c0_28, %c0_29] : memref<1x1x2x32xf32, #tpu.memory_space<vmem>>, vector<1x1x2x32xf32>
    %65 = vector.shape_cast %64 : vector<1x1x2x32xf32> to vector<2x32xf32>
    %66 = vector.shape_cast %63 : vector<2x32xf32> to vector<1x1x2x32xf32>
    tpu.vector_store %arg5[%c0_26, %c0_27, %c0_28, %c0_29], %66 {strides = array<i32>} : memref<1x1x2x32xf32, #tpu.memory_space<vmem>>, vector<1x1x2x32xf32>,
    return
  }
  func.func @transform_0(%arg0: i32, %arg1: i32) -> (i32, i32, i32, i32) {
    %c0_i32 = arith.constant 0 : i32
    %c0_i32_0 = arith.constant 0 : i32
    %c0_i32_1 = arith.constant 0 : i32
    %c0_i32_2 = arith.constant 0 : i32
    return %arg0, %c0_i32, %c0_i32_0, %c0_i32_1 : i32, i32, i32, i32
  }
  func.func @transform_1(%arg0: i32, %arg1: i32) -> (i32, i32, i32, i32) {
    %c0_i32 = arith.constant 0 : i32
    %c0_i32_0 = arith.constant 0 : i32
    %c0_i32_1 = arith.constant 0 : i32
    %c0_i32_2 = arith.constant 0 : i32
    %c0_i32_3 = arith.constant 0 : i32
    return %c0_i32, %c0_i32_0, %c0_i32_1, %c0_i32_2 : i32, i32, i32, i32
  }
  func.func @transform_2(%arg0: i32, %arg1: i32) -> (i32, i32, i32, i32) {
    %c0_i32 = arith.constant 0 : i32
    %c0_i32_0 = arith.constant 0 : i32
    %c0_i32_1 = arith.constant 0 : i32
    return %arg0, %arg1, %c0_i32, %c0_i32_0 : i32, i32, i32, i32
  }
  func.func @transform_3(%arg0: i32, %arg1: i32) -> (i32, i32, i32, i32) {
    %c0_i32 = arith.constant 0 : i32
    %c0_i32_0 = arith.constant 0 : i32
    %c0_i32_1 = arith.constant 0 : i32
    return %arg0, %arg1, %c0_i32, %c0_i32_0 : i32, i32, i32, i32
  }
}

</mosaic_0001>

<llo_original>
// kernel: tpu_custom_call.1
$region0: #{tpu_custom_call.1}
  #allocation0 [shape = 'u32[]', space=smem, size = 0x4, offset = 0x4, fixed_abs, tag = 'smem constant byte address 0x4 - core index']
  #allocation1 [shape = 'u32[144,128]{1,0:T(1,128)}', space=vmem, size = 0x12000, scoped, tag = 'internal scratch']
  %s0 = inlined_call_operand.vmem [shape: bf16[2,10,10,8], index: 0, kind: input, shape index: {}]
  %s1 = inlined_call_operand.vmem [shape: bf16[2,2,32,8], index: 1, kind: input, shape index: {}]
  %s2 = inlined_call_operand.hbm [shape: f32[2,8,8,32], index: 2, kind: output, shape index: {0}]
  %s3 = inlined_call_operand.hbm [shape: f32[2,1,2,32], index: 3, kind: output, shape index: {1}]
  %4 = xla_tuple %s2, %s3
  %s5 = sld [smem:[#allocation0]]
  $region49: #{tpu_custom_call.1} parent=0
    _
  %s7 = ssub.s32 1, %s5
  %s8 = scalar_select 0, %s7, %s5
  $region1: #{tpu_custom_call.1} parent=0
    #allocation2 [shape = 'u8[65536]{0}', space=vmem, size = 0x10000, scoped, tag = 'output window, operand 0']
    #allocation3 [shape = 's32[2]{0}', space=sflag, size = 0x8, scoped, tag = 'scoped memory for tpu_custom_call.1']
    #allocation4 [shape = 'u8[2048]{0}', space=vmem, size = 0x800, scoped, tag = 'output window, operand 1']
    #allocation5 [shape = 's32[2]{0}', space=sflag, size = 0x8, scoped, tag = 'scoped memory for tpu_custom_call.1']
    %9 = vsyncpa [#allocation3], 0
    %s10 = scalar_lea.sflag [#allocation3], 1
    %11 = vsyncpa %s10, 0
    %12 = vsyncpa [#allocation5], 0
    %s13 = scalar_lea.sflag [#allocation5], 1
    %14 = vsyncpa %s13, 0
    loop: start=0, step=1, limit=4
    $region2: #{tpu_custom_call.1} parent=1 // loop_pre_header
      _
    $region3: #{tpu_custom_call.1} parent=1 // loop_header
      %s16 = sphi 0, %s20
      %p17 = scmp.ge.s32.totalorder %s16, 4
      %s23 = sphi 0, %s35
      %s24 = sphi 0, %s31
      %s25 = sphi 0, %s23
      %s26 = sphi 0, %s24
      %s27 = sphi 0, %s25
      %s28 = sphi 0, %s26
      %s38 = sphi 0, %s40
      %s41 = sphi 0, %s38
      %s42 = sphi 0, %s41
      %s58 = sphi 0, %s42
      %s62 = sphi 0, %s62
      %s64 = sphi 0, %s62
      %s65 = sphi 0, %s64
      %s79 = sphi 0, %s65
      %s87 = sphi 0, %s89
      %s90 = sphi 0, %s87
      %s91 = sphi 0, %s90
      %s107 = sphi 0, %s91
      %s115 = sphi 0, %s117
      %s118 = sphi 0, %s115
      %s119 = sphi 0, %s118
      %s135 = sphi 0, %s119
    $region4: #{tpu_custom_call.1} parent=1 // loop_header_branch
      %19 = sbr.rel (%p17) target = $region8
    $region5: #{tpu_custom_call.1} parent=1 // loop_body
      %s21 = ssub.s32 %s16, 1
      %s22 = ssub.s32 %s16, 2
      %s29 = sadd.s32 1, %s24
      %p30 = scmp.ge.s32.totalorder %s29, 1
      %s31 = scalar_select %p30, 0, %s29
      %s32 = sadd.s32 1, %s23
      %s33 = scalar_select %p30, %s32, %s23
      %p34 = scmp.ge.s32.totalorder %s33, 2
      %s35 = scalar_select %p34, 0, %s33
      %s36 = ssub.s32 %s23, %s35
      %p37 = scmp.eq.s32.totalorder %s36, 0
      %s39 = sadd.s32 %s38, 1
      %s40 = scalar_select %p37, %s38, %s39
      %p43 = pneg %p37
      %p44 = scmp.eq.s32.totalorder %s16, 1
      %p45 = por %p43, %p44
      %p46 = scmp.ne.s32.totalorder %s38, %s41
      %p47 = scmp.eq.s32.totalorder %s16, 0
      %p48 = por %p46, %p47
      %p49 = scmp.ne.s32.totalorder %s38, %s41
      %p50 = scmp.eq.s32.totalorder %s21, 1
      %p51 = por %p49, %p50
      %p52 = scmp.ne.s32.totalorder %s41, %s42
      %p53 = scmp.eq.s32.totalorder %s21, 0
      %p54 = por %p52, %p53
      %p55 = scmp.ne.s32.totalorder %s41, %s42
      %p56 = scmp.eq.s32.totalorder %s22, 1
      %p57 = por %p55, %p56
      %p59 = scmp.ne.s32.totalorder %s42, %s58
      %p60 = scmp.eq.s32.totalorder %s22, 0
      %p61 = por %p59, %p60
      %s63 = sadd.s32 %s62, 1
      %p66 = scmp.eq.s32.totalorder %s16, 1
      %p67 = scmp.ne.s32.totalorder %s62, %s64
      %p68 = scmp.eq.s32.totalorder %s16, 0
      %p69 = por %p67, %p68
      %p70 = scmp.ne.s32.totalorder %s62, %s64
      %p71 = scmp.eq.s32.totalorder %s21, 1
      %p72 = por %p70, %p71
      %p73 = scmp.ne.s32.totalorder %s64, %s65
      %p74 = scmp.eq.s32.totalorder %s21, 0
      %p75 = por %p73, %p74
      %p76 = scmp.ne.s32.totalorder %s64, %s65
      %p77 = scmp.eq.s32.totalorder %s22, 1
      %p78 = por %p76, %p77
      %p80 = scmp.ne.s32.totalorder %s65, %s79
      %p81 = scmp.eq.s32.totalorder %s22, 0
      %p82 = por %p80, %p81
      %s83 = ssub.s32 %s23, %s35
      %s84 = ssub.s32 %s24, %s31
      %s85 = sor.u32 %s83, %s84
      %p86 = scmp.eq.s32.totalorder %s85, 0
      %s88 = sadd.s32 %s87, 1
      %s89 = scalar_select %p86, %s87, %s88
      %p92 = pneg %p86
      %p93 = scmp.eq.s32.totalorder %s16, 1
      %p94 = por %p92, %p93
      %p95 = scmp.ne.s32.totalorder %s87, %s90
      %p96 = scmp.eq.s32.totalorder %s16, 0
      %p97 = por %p95, %p96
      %p98 = scmp.ne.s32.totalorder %s87, %s90
      %p99 = scmp.eq.s32.totalorder %s21, 1
      %p100 = por %p98, %p99
      %p101 = scmp.ne.s32.totalorder %s90, %s91
      %p102 = scmp.eq.s32.totalorder %s21, 0
      %p103 = por %p101, %p102
      %p104 = scmp.ne.s32.totalorder %s90, %s91
      %p105 = scmp.eq.s32.totalorder %s22, 1
      %p106 = por %p104, %p105
      %p108 = scmp.ne.s32.totalorder %s91, %s107
      %p109 = scmp.eq.s32.totalorder %s22, 0
      %p110 = por %p108, %p109
      %s111 = ssub.s32 %s23, %s35
      %s112 = ssub.s32 %s24, %s31
      %s113 = sor.u32 %s111, %s112
      %p114 = scmp.eq.s32.totalorder %s113, 0
      %s116 = sadd.s32 %s115, 1
      %s117 = scalar_select %p114, %s115, %s116
      %p120 = pneg %p114
      %p121 = scmp.eq.s32.totalorder %s16, 1
      %p122 = por %p120, %p121
      %p123 = scmp.ne.s32.totalorder %s115, %s118
      %p124 = scmp.eq.s32.totalorder %s16, 0
      %p125 = por %p123, %p124
      %p126 = scmp.ne.s32.totalorder %s115, %s118
      %p127 = scmp.eq.s32.totalorder %s21, 1
      %p128 = por %p126, %p127
      %p129 = scmp.ne.s32.totalorder %s118, %s119
      %p130 = scmp.eq.s32.totalorder %s21, 0
      %p131 = por %p129, %p130
      %p132 = scmp.ne.s32.totalorder %s118, %s119
      %p133 = scmp.eq.s32.totalorder %s22, 1
      %p134 = por %p132, %p133
      %p136 = scmp.ne.s32.totalorder %s119, %s135
      %p137 = scmp.eq.s32.totalorder %s22, 0
      %p138 = por %p136, %p137
      %p139 = scmp.le.s32.totalorder 1, %s16
      %p140 = scmp.lt.s32.totalorder %s16, 3
      %p141 = pnand %p139, %p140
      %p142 = pneg %p141
      // Predicated region
      $region9: #{tpu_custom_call.1} parent=5 // pred_check
        _
      $region10: #{tpu_custom_call.1} parent=5 // pred_check_branch
        %144 = sbr.rel (%p141) target = $region12
      $region11: #{tpu_custom_call.1} parent=5 // pred_region
        %s145 = ssub.s32 %s16, 1
        // Predicated region
        $region13: #{tpu_custom_call.1} parent=11 // pred_check
          %p146 = pneg %p75
        $region14: #{tpu_custom_call.1} parent=11 // pred_check_branch
          %148 = sbr.rel (%p146) target = $region16
        $region15: #{tpu_custom_call.1} parent=11 // pred_region
          _
        $region16: #{tpu_custom_call.1} parent=11 // pred_fallthru
          _
      $region12: #{tpu_custom_call.1} parent=5 // pred_fallthru
        _
      %p149 = scmp.lt.s32.totalorder %s16, 2
      // Predicated region
      $region17: #{tpu_custom_call.1} parent=5 // pred_check
        %p150 = pneg %p149
      $region18: #{tpu_custom_call.1} parent=5 // pred_check_branch
        %152 = sbr.rel (%p150) target = $region20
      $region19: #{tpu_custom_call.1} parent=5 // pred_region
        // Predicated region
        $region21: #{tpu_custom_call.1} parent=19 // pred_check
          %p153 = pneg %p48
        $region22: #{tpu_custom_call.1} parent=19 // pred_check_branch
          %155 = sbr.rel (%p153) target = $region24
        $region23: #{tpu_custom_call.1} parent=19 // pred_region
          %p156 = scmp.lt.s32.totalorder %s23, 1
          %s157 = scalar_select %p156, %s23, 1
          %s158 = smul.addr %s157, 20
          %s159 = smul.addr %s158, 4
          %s160 = scalar_lea.vmem %s0, %s159
        $region24: #{tpu_custom_call.1} parent=19 // pred_fallthru
          _
      $region20: #{tpu_custom_call.1} parent=5 // pred_fallthru
        _
      %p161 = scmp.le.s32.totalorder 1, %s16
      %p162 = scmp.lt.s32.totalorder %s16, 3
      %p163 = pnand %p161, %p162
      %p164 = pneg %p163
      // Predicated region
      $region25: #{tpu_custom_call.1} parent=5 // pred_check
        _
      $region26: #{tpu_custom_call.1} parent=5 // pred_check_branch
        %166 = sbr.rel (%p163) target = $region28
      $region27: #{tpu_custom_call.1} parent=5 // pred_region
        %s167 = ssub.s32 %s16, 1
        %p168 = scmp.lt.s32.totalorder %s25, 1
        %s169 = scalar_select %p168, %s25, 1
        %s170 = smul.addr %s169, 20
        %s171 = smul.addr %s170, 4
        %s172 = scalar_lea.vmem %s0, %s171
        %p173 = pneg %p54
        %p174 = pneg %p51
        %p175 = pneg %p75
        %p176 = pneg %p72
        %p177 = pneg %p103
        %p178 = pneg %p100
        %s179 = sand.u32 %s90, 1
        %s180 = scalar_lea.sflag [#allocation3], %s179
        %s181 = sand.u32 %s90, 1
        %s182 = smul.addr %s181, 64
        %s183 = scalar_lea.vmem [#allocation2], %s182
        %p184 = pneg %p131
        %p185 = pneg %p128
        %s186 = sand.u32 %s118, 1
        %s187 = scalar_lea.sflag [#allocation5], %s186
        %s188 = sand.u32 %s118, 1
        %s189 = smul.addr %s188, 2
        %s190 = scalar_lea.vmem [#allocation4], %s189
        %p191 = scmp.lt.s32.totalorder %s25, 1
        %s192 = scalar_select %p191, %s25, 1
        %s193 = smul.addr %s192, 20
        %s194 = smul.addr %s193, 4
        %s195 = scalar_lea.vmem %s0, %s194
        %s196 = smul.u32 8, %s26
        %s198 = smul.u32 %s26, 8
        %s199 = smul.u32 %s198, 2
        %s200 = smul.addr %s199, 4
        %s201 = scalar_lea.vmem %s195, %s200
        %v202 = vld [vmem:[%s201] sm:$0xf]
        %v203 = vld [vmem:[%s201 + $0x4] sm:$0x1]
        %v204 = vld [vmem:[%s201 + $0x8] sm:$0xf]
        %v205 = vld [vmem:[%s201 + $0xc] sm:$0x1]
        %v206 = vld [vmem:[%s201 + $0x10] sm:$0xf]
        %v207 = vld [vmem:[%s201 + $0x14] sm:$0x1]
        %v208 = vld [vmem:[%s201 + $0x18] sm:$0xf]
        %v209 = vld [vmem:[%s201 + $0x1c] sm:$0x1]
        %v210 = vld [vmem:[%s201 + $0x20] sm:$0xf]
        %v211 = vld [vmem:[%s201 + $0x24] sm:$0x1]
        %v212 = vld [vmem:[%s201 + $0x28] sm:$0xf]
        %v213 = vld [vmem:[%s201 + $0x2c] sm:$0x1]
        %v214 = vld [vmem:[%s201 + $0x30] sm:$0xf]
        %v215 = vld [vmem:[%s201 + $0x34] sm:$0x1]
        %v216 = vld [vmem:[%s201 + $0x38] sm:$0xf]
        %v217 = vld [vmem:[%s201 + $0x3c] sm:$0x1]
        %v218 = vld [vmem:[%s201 + $0x40] sm:$0xf]
        %v219 = vld [vmem:[%s201 + $0x44] sm:$0x1]
        %v220 = vld [vmem:[%s201 + $0x48] sm:$0xf]
        %v221 = vld [vmem:[%s201 + $0x4c] sm:$0x1]
        %vm222 = vsmask.f32 3328
        %vm223 = vsmask.f32 7440
        %vm224 = vmor %vm222, %vm223
        %v226 = vshrl.u32 %v202, 16
        %v228 = vrot.slane %v226, 4
        %v229 = vshll.u32 %v202, 16
        %v231 = vrot.slane %v229, 5
        %v232 = vor.u32 %v228, %v231
        %v233 = vrot.slane %v232, 4
        %v235 = vshll.u32 %v203, 16
        %v237 = vrot.slane %v235, 5
        %v238 = vsel %vm224, %v233, %v237
        %v240 = vshrl.u32 %v204, 16
        %v242 = vrot.slane %v240, 4
        %v243 = vshll.u32 %v204, 16
        %v245 = vrot.slane %v243, 5
        %v246 = vor.u32 %v242, %v245
        %v247 = vrot.slane %v246, 4
        %v249 = vshll.u32 %v205, 16
        %v251 = vrot.slane %v249, 5
        %v252 = vsel %vm224, %v247, %v251
        %v254 = vshrl.u32 %v206, 16
        %v256 = vrot.slane %v254, 4
        %v257 = vshll.u32 %v206, 16
        %v259 = vrot.slane %v257, 5
        %v260 = vor.u32 %v256, %v259
        %v261 = vrot.slane %v260, 4
        %v263 = vshll.u32 %v207, 16
        %v265 = vrot.slane %v263, 5
        %v266 = vsel %vm224, %v261, %v265
        %v268 = vshrl.u32 %v208, 16
        %v270 = vrot.slane %v268, 4
        %v271 = vshll.u32 %v208, 16
        %v273 = vrot.slane %v271, 5
        %v274 = vor.u32 %v270, %v273
        %v275 = vrot.slane %v274, 4
        %v277 = vshll.u32 %v209, 16
        %v279 = vrot.slane %v277, 5
        %v280 = vsel %vm224, %v275, %v279
        %v282 = vshrl.u32 %v210, 16
        %v284 = vrot.slane %v282, 4
        %v285 = vshll.u32 %v210, 16
        %v287 = vrot.slane %v285, 5
        %v288 = vor.u32 %v284, %v287
        %v289 = vrot.slane %v288, 4
        %v291 = vshll.u32 %v211, 16
        %v293 = vrot.slane %v291, 5
        %v294 = vsel %vm224, %v289, %v293
        %v296 = vshrl.u32 %v212, 16
        %v298 = vrot.slane %v296, 4
        %v299 = vshll.u32 %v212, 16
        %v301 = vrot.slane %v299, 5
        %v302 = vor.u32 %v298, %v301
        %v303 = vrot.slane %v302, 4
        %v305 = vshll.u32 %v213, 16
        %v307 = vrot.slane %v305, 5
        %v308 = vsel %vm224, %v303, %v307
        %v310 = vshrl.u32 %v214, 16
        %v312 = vrot.slane %v310, 4
        %v313 = vshll.u32 %v214, 16
        %v315 = vrot.slane %v313, 5
        %v316 = vor.u32 %v312, %v315
        %v317 = vrot.slane %v316, 4
        %v319 = vshll.u32 %v215, 16
        %v321 = vrot.slane %v319, 5
        %v322 = vsel %vm224, %v317, %v321
        %v324 = vshrl.u32 %v216, 16
        %v326 = vrot.slane %v324, 4
        %v327 = vshll.u32 %v216, 16
        %v329 = vrot.slane %v327, 5
        %v330 = vor.u32 %v326, %v329
        %v331 = vrot.slane %v330, 4
        %v333 = vshll.u32 %v217, 16
        %v335 = vrot.slane %v333, 5
        %v336 = vsel %vm224, %v331, %v335
        %v338 = vshrl.u32 %v218, 16
        %v340 = vrot.slane %v338, 4
        %v341 = vshll.u32 %v218, 16
        %v343 = vrot.slane %v341, 5
        %v344 = vor.u32 %v340, %v343
        %v345 = vrot.slane %v344, 4
        %v347 = vshll.u32 %v219, 16
        %v349 = vrot.slane %v347, 5
        %v350 = vsel %vm224, %v345, %v349
        %v359 = vunpack.c.l.b16 %v202
        %v360 = vunpack.c.l.b16 %v204
        %v361 = vunpack.c.l.b16 %v206
        %v362 = vunpack.c.l.b16 %v208
        %v363 = vunpack.c.l.b16 %v210
        %v364 = vunpack.c.l.b16 %v212
        %v365 = vunpack.c.l.b16 %v214
        %v366 = vunpack.c.l.b16 %v216
        %v367 = vpack.c.b16 %v360, %v359
        %v368 = vpack.c.b16 %v362, %v361
        %v369 = vpack.c.b16 %v364, %v363
        %v370 = vpack.c.b16 %v366, %v365
        %v371 = vunpack.c.l.b16 %v238
        %v372 = vunpack.c.l.b16 %v252
        %v373 = vunpack.c.l.b16 %v266
        %v374 = vunpack.c.l.b16 %v280
        %v375 = vunpack.c.l.b16 %v294
        %v376 = vunpack.c.l.b16 %v308
        %v377 = vunpack.c.l.b16 %v322
        %v378 = vunpack.c.l.b16 %v336
        %v379 = vpack.c.b16 %v372, %v371
        %v380 = vpack.c.b16 %v374, %v373
        %v381 = vpack.c.b16 %v376, %v375
        %v382 = vpack.c.b16 %v378, %v377
        %383 = vrot.lane.b32.xlu0 %v379, 8
        %v384 = vpop.permute.xlu0 %383
        %385 = vrot.lane.b32.xlu0 %v380, 8
        %v386 = vpop.permute.xlu0 %385
        %387 = vrot.lane.b32.xlu0 %v381, 8
        %v388 = vpop.permute.xlu0 %387
        %389 = vrot.lane.b32.xlu0 %v382, 8
        %v390 = vpop.permute.xlu0 %389
        %v392 = vunpack.c.l.b16 %v218
        %v393 = vpack.c.b16 %v361, %v360
        %v394 = vpack.c.b16 %v363, %v362
        %v395 = vpack.c.b16 %v365, %v364
        %v396 = vpack.c.b16 %v392, %v366
        %397 = vrot.lane.b32.xlu0 %v393, 16
        %v398 = vpop.permute.xlu0 %397
        %399 = vrot.lane.b32.xlu0 %v394, 16
        %v400 = vpop.permute.xlu0 %399
        %401 = vrot.lane.b32.xlu0 %v395, 16
        %v402 = vpop.permute.xlu0 %401
        %403 = vrot.lane.b32.xlu0 %v396, 16
        %v404 = vpop.permute.xlu0 %403
        %v405 = vunpack.c.l.b16 %v350
        %v406 = vpack.c.b16 %v373, %v372
        %v407 = vpack.c.b16 %v375, %v374
        %v408 = vpack.c.b16 %v377, %v376
        %v409 = vpack.c.b16 %v405, %v378
        %410 = vrot.lane.b32.xlu0 %v406, 24
        %v411 = vpop.permute.xlu0 %410
        %412 = vrot.lane.b32.xlu0 %v407, 24
        %v413 = vpop.permute.xlu0 %412
        %414 = vrot.lane.b32.xlu0 %v408, 24
        %v415 = vpop.permute.xlu0 %414
        %416 = vrot.lane.b32.xlu0 %v409, 24
        %v417 = vpop.permute.xlu0 %416
        %vm418 = vcmask 64512
        %v421 = vsel %vm418, %v367, %v384
        %v424 = vsel %vm418, %v368, %v386
        %v427 = vsel %vm418, %v369, %v388
        %v430 = vsel %vm418, %v370, %v390
        %vm431 = vcmask 130048
        %v433 = vsel %vm431, %v421, %v398
        %v435 = vsel %vm431, %v424, %v400
        %v437 = vsel %vm431, %v427, %v402
        %v439 = vsel %vm431, %v430, %v404
        %vm440 = vcmask 195584
        %v442 = vsel %vm440, %v433, %v411
        %v444 = vsel %vm440, %v435, %v413
        %v446 = vsel %vm440, %v437, %v415
        %v448 = vsel %vm440, %v439, %v417
        %v449 = vld [vmem:[%s1] sm:$0xf]
        %v450 = vld [vmem:[%s1 + $0x4] sm:$0xf]
        %v451 = vld [vmem:[%s1 + $0x8] sm:$0xf]
        %v452 = vld [vmem:[%s1 + $0xc] sm:$0xf]
        %v457 = vunpack.c.l.b16 %v449
        %v458 = vunpack.c.l.b16 %v450
        %v459 = vunpack.c.l.b16 %v451
        %v460 = vunpack.c.l.b16 %v452
        %v461 = vpack.c.b16 %v458, %v457
        %v462 = vpack.c.b16 %v460, %v459
        %vm465 = vcmask 261120
        %v466 = vsel %vm465, %v442, 0
        %v468 = vsel %vm465, %v444, 0
        %v470 = vsel %vm465, %v446, 0
        %v472 = vsel %vm465, %v448, 0
        %474 = vmatprep.subr.bf16.mxu0 0
        %475 = vmatpush1.bf16.msra.mxu0 %v461
        %476 = vmatprep.subr.bf16.mxu0 0
        %477 = vmatpush1.bf16.msra.mxu0 %v462
        %478 = vmatprep.subr.bf16.mxu0 0
        %479 = vmatpush1.bf16.msra.mxu0 0
        %480 = vmatprep.subr.bf16.mxu0 0
        %481 = vmatpush1.bf16.msra.mxu0 0
        %482 = vmatprep.subr.bf16.mxu0 0
        %483 = vmatpush1.bf16.msra.mxu0 0
        %484 = vmatprep.subr.bf16.mxu0 0
        %485 = vmatpush1.bf16.msra.mxu0 0
        %486 = vmatprep.subr.bf16.mxu0 0
        %487 = vmatpush1.bf16.msra.mxu0 0
        %488 = vmatprep.subr.bf16.mxu0 0
        %489 = vmatpush1.bf16.msra.mxu0 0
        %490 = vmatprep.subr.bf16.mxu0 0
        %491 = vmatpush1.bf16.msra.mxu0 0
        %492 = vmatprep.subr.bf16.mxu0 0
        %493 = vmatpush1.bf16.msra.mxu0 0
        %494 = vmatprep.subr.bf16.mxu0 0
        %495 = vmatpush1.bf16.msra.mxu0 0
        %496 = vmatprep.subr.bf16.mxu0 0
        %497 = vmatpush1.bf16.msra.mxu0 0
        %498 = vmatprep.subr.bf16.mxu0 0
        %499 = vmatpush1.bf16.msra.mxu0 0
        %500 = vmatprep.subr.bf16.mxu0 0
        %501 = vmatpush1.bf16.msra.mxu0 0
        %502 = vmatprep.subr.bf16.mxu0 0
        %503 = vmatpush1.bf16.msra.mxu0 0
        %504 = vmatprep.subr.bf16.mxu0 0
        %505 = vmatpush1.bf16.msra.mxu0 0
        %506 = vmatprep.mubr.bf16.mxu0 0
        %507 = vmatmul.mubr.bf16.gmra.mrb[0].mxu0 %v466
        %v508 = vpop.f32.mrb[0].mxu0
        %v509 = vadd.f32 0.0, %v508
        %v510 = vpop.f32.mrb[0].mxu0
        %v511 = vpop.f32.mrb[0].mxu0
        %v512 = vadd.f32 0.0, %v511
        %v513 = vpop.f32.mrb[0].mxu0
        %514 = vmatprep.mubr.bf16.mxu0 0
        %515 = vmatmul.mubr.bf16.gmra.mrb[0].mxu0 %v468
        %v516 = vpop.f32.mrb[0].mxu0
        %v517 = vadd.f32 0.0, %v516
        %v518 = vpop.f32.mrb[0].mxu0
        %v519 = vpop.f32.mrb[0].mxu0
        %v520 = vadd.f32 0.0, %v519
        %v521 = vpop.f32.mrb[0].mxu0
        %522 = vmatprep.mubr.bf16.mxu0 0
        %523 = vmatmul.mubr.bf16.gmra.mrb[0].mxu0 %v470
        %v524 = vpop.f32.mrb[0].mxu0
        %v525 = vadd.f32 0.0, %v524
        %v526 = vpop.f32.mrb[0].mxu0
        %v527 = vpop.f32.mrb[0].mxu0
        %v528 = vadd.f32 0.0, %v527
        %v529 = vpop.f32.mrb[0].mxu0
        %530 = vmatprep.mubr.bf16.mxu0 0
        %531 = vmatmul.mubr.bf16.gmra.mrb[0].mxu0 %v472
        %v532 = vpop.f32.mrb[0].mxu0
        %v533 = vadd.f32 0.0, %v532
        %v534 = vpop.f32.mrb[0].mxu0
        %v535 = vpop.f32.mrb[0].mxu0
        %v536 = vadd.f32 0.0, %v535
        %v537 = vpop.f32.mrb[0].mxu0
        %538 = vdwg.mxu0
        %vm547 = vcmask 1042432
        %vm548 = vcmask 1046532
        %vm549 = vmor %vm547, %vm548
        %v550 = vrot.slane %v202, 5
        %v551 = vrot.slane %v550, 4
        %v552 = vrot.slane %v203, 5
        %v553 = vsel %vm549, %v551, %v552
        %v554 = vrot.slane %v204, 5
        %v555 = vrot.slane %v554, 4
        %v556 = vrot.slane %v205, 5
        %v557 = vsel %vm549, %v555, %v556
        %v558 = vrot.slane %v206, 5
        %v559 = vrot.slane %v558, 4
        %v560 = vrot.slane %v207, 5
        %v561 = vsel %vm549, %v559, %v560
        %v562 = vrot.slane %v208, 5
        %v563 = vrot.slane %v562, 4
        %v564 = vrot.slane %v209, 5
        %v565 = vsel %vm549, %v563, %v564
        %v566 = vrot.slane %v210, 5
        %v567 = vrot.slane %v566, 4
        %v568 = vrot.slane %v211, 5
        %v569 = vsel %vm549, %v567, %v568
        %v570 = vrot.slane %v212, 5
        %v571 = vrot.slane %v570, 4
        %v572 = vrot.slane %v213, 5
        %v573 = vsel %vm549, %v571, %v572
        %v574 = vrot.slane %v214, 5
        %v575 = vrot.slane %v574, 4
        %v576 = vrot.slane %v215, 5
        %v577 = vsel %vm549, %v575, %v576
        %v578 = vrot.slane %v216, 5
        %v579 = vrot.slane %v578, 4
        %v580 = vrot.slane %v217, 5
        %v581 = vsel %vm549, %v579, %v580
        %v583 = vrot.slane %v218, 5
        %v584 = vrot.slane %v583, 4
        %v585 = vrot.slane %v219, 5
        %v586 = vsel %vm549, %v584, %v585
        %v587 = vunpack.c.l.b16 %v553
        %v588 = vunpack.c.l.b16 %v557
        %v589 = vunpack.c.l.b16 %v561
        %v590 = vunpack.c.l.b16 %v565
        %v591 = vunpack.c.l.b16 %v569
        %v592 = vunpack.c.l.b16 %v573
        %v593 = vunpack.c.l.b16 %v577
        %v594 = vunpack.c.l.b16 %v581
        %v595 = vpack.c.b16 %v588, %v587
        %v596 = vpack.c.b16 %v590, %v589
        %v597 = vpack.c.b16 %v592, %v591
        %v598 = vpack.c.b16 %v594, %v593
        %599 = vrot.lane.b32.xlu0 %v595, 8
        %v600 = vpop.permute.xlu0 %599
        %601 = vrot.lane.b32.xlu0 %v596, 8
        %v602 = vpop.permute.xlu0 %601
        %603 = vrot.lane.b32.xlu0 %v597, 8
        %v604 = vpop.permute.xlu0 %603
        %605 = vrot.lane.b32.xlu0 %v598, 8
        %v606 = vpop.permute.xlu0 %605
        %607 = vrot.lane.b32.xlu0 %v406, 16
        %v608 = vpop.permute.xlu0 %607
        %609 = vrot.lane.b32.xlu0 %v407, 16
        %v610 = vpop.permute.xlu0 %609
        %611 = vrot.lane.b32.xlu0 %v408, 16
        %v612 = vpop.permute.xlu0 %611
        %613 = vrot.lane.b32.xlu0 %v409, 16
        %v614 = vpop.permute.xlu0 %613
        %v615 = vunpack.c.l.b16 %v586
        %v616 = vpack.c.b16 %v589, %v588
        %v617 = vpack.c.b16 %v591, %v590
        %v618 = vpack.c.b16 %v593, %v592
        %v619 = vpack.c.b16 %v615, %v594
        %620 = vrot.lane.b32.xlu0 %v616, 24
        %v621 = vpop.permute.xlu0 %620
        %622 = vrot.lane.b32.xlu0 %v617, 24
        %v623 = vpop.permute.xlu0 %622
        %624 = vrot.lane.b32.xlu0 %v618, 24
        %v625 = vpop.permute.xlu0 %624
        %626 = vrot.lane.b32.xlu0 %v619, 24
        %v627 = vpop.permute.xlu0 %626
        %v630 = vsel %vm418, %v379, %v600
        %v633 = vsel %vm418, %v380, %v602
        %v636 = vsel %vm418, %v381, %v604
        %v639 = vsel %vm418, %v382, %v606
        %v641 = vsel %vm431, %v630, %v608
        %v643 = vsel %vm431, %v633, %v610
        %v645 = vsel %vm431, %v636, %v612
        %v647 = vsel %vm431, %v639, %v614
        %v649 = vsel %vm440, %v641, %v621
        %v651 = vsel %vm440, %v643, %v623
        %v653 = vsel %vm440, %v645, %v625
        %v655 = vsel %vm440, %v647, %v627
        %s656 = scalar_lea.vmem %s1, 16
        %v657 = vld [vmem:[%s656] sm:$0xf]
        %v658 = vld [vmem:[%s656 + $0x4] sm:$0xf]
        %v659 = vld [vmem:[%s656 + $0x8] sm:$0xf]
        %v660 = vld [vmem:[%s656 + $0xc] sm:$0xf]
        %v665 = vunpack.c.l.b16 %v657
        %v666 = vunpack.c.l.b16 %v658
        %v667 = vunpack.c.l.b16 %v659
        %v668 = vunpack.c.l.b16 %v660
        %v669 = vpack.c.b16 %v666, %v665
        %v670 = vpack.c.b16 %v668, %v667
        %v673 = vsel %vm465, %v649, 0
        %v675 = vsel %vm465, %v651, 0
        %v677 = vsel %vm465, %v653, 0
        %v679 = vsel %vm465, %v655, 0
        %681 = vmatprep.subr.bf16.mxu0 0
        %682 = vmatpush1.bf16.msra.mxu0 %v669
        %683 = vmatprep.subr.bf16.mxu0 0
        %684 = vmatpush1.bf16.msra.mxu0 %v670
        %685 = vmatprep.subr.bf16.mxu0 0
        %686 = vmatpush1.bf16.msra.mxu0 0
        %687 = vmatprep.subr.bf16.mxu0 0
        %688 = vmatpush1.bf16.msra.mxu0 0
        %689 = vmatprep.subr.bf16.mxu0 0
        %690 = vmatpush1.bf16.msra.mxu0 0
        %691 = vmatprep.subr.bf16.mxu0 0
        %692 = vmatpush1.bf16.msra.mxu0 0
        %693 = vmatprep.subr.bf16.mxu0 0
        %694 = vmatpush1.bf16.msra.mxu0 0
        %695 = vmatprep.subr.bf16.mxu0 0
        %696 = vmatpush1.bf16.msra.mxu0 0
        %697 = vmatprep.subr.bf16.mxu0 0
        %698 = vmatpush1.bf16.msra.mxu0 0
        %699 = vmatprep.subr.bf16.mxu0 0
        %700 = vmatpush1.bf16.msra.mxu0 0
        %701 = vmatprep.subr.bf16.mxu0 0
        %702 = vmatpush1.bf16.msra.mxu0 0
        %703 = vmatprep.subr.bf16.mxu0 0
        %704 = vmatpush1.bf16.msra.mxu0 0
        %705 = vmatprep.subr.bf16.mxu0 0
        %706 = vmatpush1.bf16.msra.mxu0 0
        %707 = vmatprep.subr.bf16.mxu0 0
        %708 = vmatpush1.bf16.msra.mxu0 0
        %709 = vmatprep.subr.bf16.mxu0 0
        %710 = vmatpush1.bf16.msra.mxu0 0
        %711 = vmatprep.subr.bf16.mxu0 0
        %712 = vmatpush1.bf16.msra.mxu0 0
        %713 = vmatprep.mubr.bf16.mxu0 0
        %714 = vmatmul.mubr.bf16.gmra.mrb[0].mxu0 %v673
        %v715 = vpop.f32.mrb[0].mxu0
        %v716 = vadd.f32 0.0, %v715
        %v717 = vpop.f32.mrb[0].mxu0
        %v718 = vpop.f32.mrb[0].mxu0
        %v719 = vadd.f32 0.0, %v718
        %v720 = vpop.f32.mrb[0].mxu0
        %721 = vmatprep.mubr.bf16.mxu0 0
        %722 = vmatmul.mubr.bf16.gmra.mrb[0].mxu0 %v675
        %v723 = vpop.f32.mrb[0].mxu0
        %v724 = vadd.f32 0.0, %v723
        %v725 = vpop.f32.mrb[0].mxu0
        %v726 = vpop.f32.mrb[0].mxu0
        %v727 = vadd.f32 0.0, %v726
        %v728 = vpop.f32.mrb[0].mxu0
        %729 = vmatprep.mubr.bf16.mxu0 0
        %730 = vmatmul.mubr.bf16.gmra.mrb[0].mxu0 %v677
        %v731 = vpop.f32.mrb[0].mxu0
        %v732 = vadd.f32 0.0, %v731
        %v733 = vpop.f32.mrb[0].mxu0
        %v734 = vpop.f32.mrb[0].mxu0
        %v735 = vadd.f32 0.0, %v734
        %v736 = vpop.f32.mrb[0].mxu0
        %737 = vmatprep.mubr.bf16.mxu0 0
        %738 = vmatmul.mubr.bf16.gmra.mrb[0].mxu0 %v679
        %v739 = vpop.f32.mrb[0].mxu0
        %v740 = vadd.f32 0.0, %v739
        %v741 = vpop.f32.mrb[0].mxu0
        %v742 = vpop.f32.mrb[0].mxu0
        %v743 = vadd.f32 0.0, %v742
        %v744 = vpop.f32.mrb[0].mxu0
        %745 = vdwg.mxu0
        %v747 = vshrl.u32 %v220, 16
        %v749 = vrot.slane %v747, 4
        %v750 = vshll.u32 %v220, 16
        %v752 = vrot.slane %v750, 5
        %v753 = vor.u32 %v749, %v752
        %v754 = vrot.slane %v753, 4
        %v756 = vshll.u32 %v221, 16
        %v758 = vrot.slane %v756, 5
        %v759 = vsel %vm224, %v754, %v758
        %760 = vrot.lane.b32.xlu0 %v406, 8
        %v761 = vpop.permute.xlu0 %760
        %762 = vrot.lane.b32.xlu0 %v407, 8
        %v763 = vpop.permute.xlu0 %762
        %764 = vrot.lane.b32.xlu0 %v408, 8
        %v765 = vpop.permute.xlu0 %764
        %766 = vrot.lane.b32.xlu0 %v409, 8
        %v767 = vpop.permute.xlu0 %766
        %v769 = vunpack.c.l.b16 %v220
        %v770 = vpack.c.b16 %v769, %v392
        %771 = vrot.lane.b32.xlu0 %v368, 16
        %v772 = vpop.permute.xlu0 %771
        %773 = vrot.lane.b32.xlu0 %v369, 16
        %v774 = vpop.permute.xlu0 %773
        %775 = vrot.lane.b32.xlu0 %v370, 16
        %v776 = vpop.permute.xlu0 %775
        %777 = vrot.lane.b32.xlu0 %v770, 16
        %v778 = vpop.permute.xlu0 %777
        %v779 = vunpack.c.l.b16 %v759
        %v780 = vpack.c.b16 %v779, %v405
        %781 = vrot.lane.b32.xlu0 %v380, 24
        %v782 = vpop.permute.xlu0 %781
        %783 = vrot.lane.b32.xlu0 %v381, 24
        %v784 = vpop.permute.xlu0 %783
        %785 = vrot.lane.b32.xlu0 %v382, 24
        %v786 = vpop.permute.xlu0 %785
        %787 = vrot.lane.b32.xlu0 %v780, 24
        %v788 = vpop.permute.xlu0 %787
        %v791 = vsel %vm418, %v393, %v761
        %v794 = vsel %vm418, %v394, %v763
        %v797 = vsel %vm418, %v395, %v765
        %v800 = vsel %vm418, %v396, %v767
        %v802 = vsel %vm431, %v791, %v772
        %v804 = vsel %vm431, %v794, %v774
        %v806 = vsel %vm431, %v797, %v776
        %v808 = vsel %vm431, %v800, %v778
        %v810 = vsel %vm440, %v802, %v782
        %v812 = vsel %vm440, %v804, %v784
        %v814 = vsel %vm440, %v806, %v786
        %v816 = vsel %vm440, %v808, %v788
        %s817 = scalar_lea.vmem %s1, 32
        %v818 = vld [vmem:[%s817] sm:$0xf]
        %v819 = vld [vmem:[%s817 + $0x4] sm:$0xf]
        %v820 = vld [vmem:[%s817 + $0x8] sm:$0xf]
        %v821 = vld [vmem:[%s817 + $0xc] sm:$0xf]
        %v826 = vunpack.c.l.b16 %v818
        %v827 = vunpack.c.l.b16 %v819
        %v828 = vunpack.c.l.b16 %v820
        %v829 = vunpack.c.l.b16 %v821
        %v830 = vpack.c.b16 %v827, %v826
        %v831 = vpack.c.b16 %v829, %v828
        %v834 = vsel %vm465, %v810, 0
        %v836 = vsel %vm465, %v812, 0
        %v838 = vsel %vm465, %v814, 0
        %v840 = vsel %vm465, %v816, 0
        %842 = vmatprep.subr.bf16.mxu0 0
        %843 = vmatpush1.bf16.msra.mxu0 %v830
        %844 = vmatprep.subr.bf16.mxu0 0
        %845 = vmatpush1.bf16.msra.mxu0 %v831
        %846 = vmatprep.subr.bf16.mxu0 0
        %847 = vmatpush1.bf16.msra.mxu0 0
        %848 = vmatprep.subr.bf16.mxu0 0
        %849 = vmatpush1.bf16.msra.mxu0 0
        %850 = vmatprep.subr.bf16.mxu0 0
        %851 = vmatpush1.bf16.msra.mxu0 0
        %852 = vmatprep.subr.bf16.mxu0 0
        %853 = vmatpush1.bf16.msra.mxu0 0
        %854 = vmatprep.subr.bf16.mxu0 0
        %855 = vmatpush1.bf16.msra.mxu0 0
        %856 = vmatprep.subr.bf16.mxu0 0
        %857 = vmatpush1.bf16.msra.mxu0 0
        %858 = vmatprep.subr.bf16.mxu0 0
        %859 = vmatpush1.bf16.msra.mxu0 0
        %860 = vmatprep.subr.bf16.mxu0 0
        %861 = vmatpush1.bf16.msra.mxu0 0
        %862 = vmatprep.subr.bf16.mxu0 0
        %863 = vmatpush1.bf16.msra.mxu0 0
        %864 = vmatprep.subr.bf16.mxu0 0
        %865 = vmatpush1.bf16.msra.mxu0 0
        %866 = vmatprep.subr.bf16.mxu0 0
        %867 = vmatpush1.bf16.msra.mxu0 0
        %868 = vmatprep.subr.bf16.mxu0 0
        %869 = vmatpush1.bf16.msra.mxu0 0
        %870 = vmatprep.subr.bf16.mxu0 0
        %871 = vmatpush1.bf16.msra.mxu0 0
        %872 = vmatprep.subr.bf16.mxu0 0
        %873 = vmatpush1.bf16.msra.mxu0 0
        %874 = vmatprep.mubr.bf16.mxu0 0
        %875 = vmatmul.mubr.bf16.gmra.mrb[0].mxu0 %v834
        %v876 = vpop.f32.mrb[0].mxu0
        %v877 = vadd.f32 0.0, %v876
        %v878 = vpop.f32.mrb[0].mxu0
        %v879 = vpop.f32.mrb[0].mxu0
        %v880 = vadd.f32 0.0, %v879
        %v881 = vpop.f32.mrb[0].mxu0
        %882 = vmatprep.mubr.bf16.mxu0 0
        %883 = vmatmul.mubr.bf16.gmra.mrb[0].mxu0 %v836
        %v884 = vpop.f32.mrb[0].mxu0
        %v885 = vadd.f32 0.0, %v884
        %v886 = vpop.f32.mrb[0].mxu0
        %v887 = vpop.f32.mrb[0].mxu0
        %v888 = vadd.f32 0.0, %v887
        %v889 = vpop.f32.mrb[0].mxu0
        %890 = vmatprep.mubr.bf16.mxu0 0
        %891 = vmatmul.mubr.bf16.gmra.mrb[0].mxu0 %v838
        %v892 = vpop.f32.mrb[0].mxu0
        %v893 = vadd.f32 0.0, %v892
        %v894 = vpop.f32.mrb[0].mxu0
        %v895 = vpop.f32.mrb[0].mxu0
        %v896 = vadd.f32 0.0, %v895
        %v897 = vpop.f32.mrb[0].mxu0
        %898 = vmatprep.mubr.bf16.mxu0 0
        %899 = vmatmul.mubr.bf16.gmra.mrb[0].mxu0 %v840
        %v900 = vpop.f32.mrb[0].mxu0
        %v901 = vadd.f32 0.0, %v900
        %v902 = vpop.f32.mrb[0].mxu0
        %v903 = vpop.f32.mrb[0].mxu0
        %v904 = vadd.f32 0.0, %v903
        %v905 = vpop.f32.mrb[0].mxu0
        %906 = vdwg.mxu0
        %v908 = vrot.slane %v220, 5
        %v909 = vrot.slane %v908, 4
        %v910 = vrot.slane %v221, 5
        %v911 = vsel %vm549, %v909, %v910
        %912 = vrot.lane.b32.xlu0 %v616, 8
        %v913 = vpop.permute.xlu0 %912
        %914 = vrot.lane.b32.xlu0 %v617, 8
        %v915 = vpop.permute.xlu0 %914
        %916 = vrot.lane.b32.xlu0 %v618, 8
        %v917 = vpop.permute.xlu0 %916
        %918 = vrot.lane.b32.xlu0 %v619, 8
        %v919 = vpop.permute.xlu0 %918
        %920 = vrot.lane.b32.xlu0 %v380, 16
        %v921 = vpop.permute.xlu0 %920
        %922 = vrot.lane.b32.xlu0 %v381, 16
        %v923 = vpop.permute.xlu0 %922
        %924 = vrot.lane.b32.xlu0 %v382, 16
        %v925 = vpop.permute.xlu0 %924
        %926 = vrot.lane.b32.xlu0 %v780, 16
        %v927 = vpop.permute.xlu0 %926
        %v928 = vunpack.c.l.b16 %v911
        %v929 = vpack.c.b16 %v928, %v615
        %930 = vrot.lane.b32.xlu0 %v596, 24
        %v931 = vpop.permute.xlu0 %930
        %932 = vrot.lane.b32.xlu0 %v597, 24
        %v933 = vpop.permute.xlu0 %932
        %934 = vrot.lane.b32.xlu0 %v598, 24
        %v935 = vpop.permute.xlu0 %934
        %936 = vrot.lane.b32.xlu0 %v929, 24
        %v937 = vpop.permute.xlu0 %936
        %v940 = vsel %vm418, %v406, %v913
        %v943 = vsel %vm418, %v407, %v915
        %v946 = vsel %vm418, %v408, %v917
        %v949 = vsel %vm418, %v409, %v919
        %v951 = vsel %vm431, %v940, %v921
        %v953 = vsel %vm431, %v943, %v923
        %v955 = vsel %vm431, %v946, %v925
        %v957 = vsel %vm431, %v949, %v927
        %v959 = vsel %vm440, %v951, %v931
        %v961 = vsel %vm440, %v953, %v933
        %v963 = vsel %vm440, %v955, %v935
        %v965 = vsel %vm440, %v957, %v937
        %s966 = scalar_lea.vmem %s1, 48
        %v967 = vld [vmem:[%s966] sm:$0xf]
        %v968 = vld [vmem:[%s966 + $0x4] sm:$0xf]
        %v969 = vld [vmem:[%s966 + $0x8] sm:$0xf]
        %v970 = vld [vmem:[%s966 + $0xc] sm:$0xf]
        %v975 = vunpack.c.l.b16 %v967
        %v976 = vunpack.c.l.b16 %v968
        %v977 = vunpack.c.l.b16 %v969
        %v978 = vunpack.c.l.b16 %v970
        %v979 = vpack.c.b16 %v976, %v975
        %v980 = vpack.c.b16 %v978, %v977
        %v983 = vsel %vm465, %v959, 0
        %v985 = vsel %vm465, %v961, 0
        %v987 = vsel %vm465, %v963, 0
        %v989 = vsel %vm465, %v965, 0
        %991 = vmatprep.subr.bf16.mxu0 0
        %992 = vmatpush1.bf16.msra.mxu0 %v979
        %993 = vmatprep.subr.bf16.mxu0 0
        %994 = vmatpush1.bf16.msra.mxu0 %v980
        %995 = vmatprep.subr.bf16.mxu0 0
        %996 = vmatpush1.bf16.msra.mxu0 0
        %997 = vmatprep.subr.bf16.mxu0 0
        %998 = vmatpush1.bf16.msra.mxu0 0
        %999 = vmatprep.subr.bf16.mxu0 0
        %1000 = vmatpush1.bf16.msra.mxu0 0
        %1001 = vmatprep.subr.bf16.mxu0 0
        %1002 = vmatpush1.bf16.msra.mxu0 0
        %1003 = vmatprep.subr.bf16.mxu0 0
        %1004 = vmatpush1.bf16.msra.mxu0 0
        %1005 = vmatprep.subr.bf16.mxu0 0
        %1006 = vmatpush1.bf16.msra.mxu0 0
        %1007 = vmatprep.subr.bf16.mxu0 0
        %1008 = vmatpush1.bf16.msra.mxu0 0
        %1009 = vmatprep.subr.bf16.mxu0 0
        %1010 = vmatpush1.bf16.msra.mxu0 0
        %1011 = vmatprep.subr.bf16.mxu0 0
        %1012 = vmatpush1.bf16.msra.mxu0 0
        %1013 = vmatprep.subr.bf16.mxu0 0
        %1014 = vmatpush1.bf16.msra.mxu0 0
        %1015 = vmatprep.subr.bf16.mxu0 0
        %1016 = vmatpush1.bf16.msra.mxu0 0
        %1017 = vmatprep.subr.bf16.mxu0 0
        %1018 = vmatpush1.bf16.msra.mxu0 0
        %1019 = vmatprep.subr.bf16.mxu0 0
        %1020 = vmatpush1.bf16.msra.mxu0 0
        %1021 = vmatprep.subr.bf16.mxu0 0
        %1022 = vmatpush1.bf16.msra.mxu0 0
        %1023 = vmatprep.mubr.bf16.mxu0 0
        %1024 = vmatmul.mubr.bf16.gmra.mrb[0].mxu0 %v983
        %v1025 = vpop.f32.mrb[0].mxu0
        %v1026 = vadd.f32 0.0, %v1025
        %v1027 = vpop.f32.mrb[0].mxu0
        %v1028 = vpop.f32.mrb[0].mxu0
        %v1029 = vadd.f32 0.0, %v1028
        %v1030 = vpop.f32.mrb[0].mxu0
        %1031 = vmatprep.mubr.bf16.mxu0 0
        %1032 = vmatmul.mubr.bf16.gmra.mrb[0].mxu0 %v985
        %v1033 = vpop.f32.mrb[0].mxu0
        %v1034 = vadd.f32 0.0, %v1033
        %v1035 = vpop.f32.mrb[0].mxu0
        %v1036 = vpop.f32.mrb[0].mxu0
        %v1037 = vadd.f32 0.0, %v1036
        %v1038 = vpop.f32.mrb[0].mxu0
        %1039 = vmatprep.mubr.bf16.mxu0 0
        %1040 = vmatmul.mubr.bf16.gmra.mrb[0].mxu0 %v987
        %v1041 = vpop.f32.mrb[0].mxu0
        %v1042 = vadd.f32 0.0, %v1041
        %v1043 = vpop.f32.mrb[0].mxu0
        %v1044 = vpop.f32.mrb[0].mxu0
        %v1045 = vadd.f32 0.0, %v1044
        %v1046 = vpop.f32.mrb[0].mxu0
        %1047 = vmatprep.mubr.bf16.mxu0 0
        %1048 = vmatmul.mubr.bf16.gmra.mrb[0].mxu0 %v989
        %v1049 = vpop.f32.mrb[0].mxu0
        %v1050 = vadd.f32 0.0, %v1049
        %v1051 = vpop.f32.mrb[0].mxu0
        %v1052 = vpop.f32.mrb[0].mxu0
        %v1053 = vadd.f32 0.0, %v1052
        %v1054 = vpop.f32.mrb[0].mxu0
        %1055 = vdwg.mxu0
        %1064 = vrot.lane.b32.xlu0 %v716, 8
        %v1065 = vpop.permute.xlu0 %1064
        %1066 = vrot.lane.b32.xlu0 %v719, 8
        %v1067 = vpop.permute.xlu0 %1066
        %1068 = vrot.lane.b32.xlu0 %v724, 8
        %v1069 = vpop.permute.xlu0 %1068
        %1070 = vrot.lane.b32.xlu0 %v727, 8
        %v1071 = vpop.permute.xlu0 %1070
        %1072 = vrot.lane.b32.xlu0 %v732, 8
        %v1073 = vpop.permute.xlu0 %1072
        %1074 = vrot.lane.b32.xlu0 %v735, 8
        %v1075 = vpop.permute.xlu0 %1074
        %1076 = vrot.lane.b32.xlu0 %v740, 8
        %v1077 = vpop.permute.xlu0 %1076
        %1078 = vrot.lane.b32.xlu0 %v743, 8
        %v1079 = vpop.permute.xlu0 %1078
        %1096 = vrot.lane.b32.xlu0 %v877, 16
        %v1097 = vpop.permute.xlu0 %1096
        %1098 = vrot.lane.b32.xlu0 %v880, 16
        %v1099 = vpop.permute.xlu0 %1098
        %1100 = vrot.lane.b32.xlu0 %v885, 16
        %v1101 = vpop.permute.xlu0 %1100
        %1102 = vrot.lane.b32.xlu0 %v888, 16
        %v1103 = vpop.permute.xlu0 %1102
        %1104 = vrot.lane.b32.xlu0 %v893, 16
        %v1105 = vpop.permute.xlu0 %1104
        %1106 = vrot.lane.b32.xlu0 %v896, 16
        %v1107 = vpop.permute.xlu0 %1106
        %1108 = vrot.lane.b32.xlu0 %v901, 16
        %v1109 = vpop.permute.xlu0 %1108
        %1110 = vrot.lane.b32.xlu0 %v904, 16
        %v1111 = vpop.permute.xlu0 %1110
        %1128 = vrot.lane.b32.xlu0 %v1026, 24
        %v1129 = vpop.permute.xlu0 %1128
        %1130 = vrot.lane.b32.xlu0 %v1029, 24
        %v1131 = vpop.permute.xlu0 %1130
        %1132 = vrot.lane.b32.xlu0 %v1034, 24
        %v1133 = vpop.permute.xlu0 %1132
        %1134 = vrot.lane.b32.xlu0 %v1037, 24
        %v1135 = vpop.permute.xlu0 %1134
        %1136 = vrot.lane.b32.xlu0 %v1042, 24
        %v1137 = vpop.permute.xlu0 %1136
        %1138 = vrot.lane.b32.xlu0 %v1045, 24
        %v1139 = vpop.permute.xlu0 %1138
        %1140 = vrot.lane.b32.xlu0 %v1050, 24
        %v1141 = vpop.permute.xlu0 %1140
        %1142 = vrot.lane.b32.xlu0 %v1053, 24
        %v1143 = vpop.permute.xlu0 %1142
        %v1152 = vsel %vm418, %v509, %v1065
        %v1153 = vsel %vm418, %v512, %v1067
        %v1154 = vsel %vm418, %v517, %v1069
        %v1155 = vsel %vm418, %v520, %v1071
        %v1156 = vsel %vm418, %v525, %v1073
        %v1157 = vsel %vm418, %v528, %v1075
        %v1158 = vsel %vm418, %v533, %v1077
        %v1159 = vsel %vm418, %v536, %v1079
        %v1160 = vsel %vm431, %v1152, %v1097
        %v1161 = vsel %vm431, %v1153, %v1099
        %v1162 = vsel %vm431, %v1154, %v1101
        %v1163 = vsel %vm431, %v1155, %v1103
        %v1164 = vsel %vm431, %v1156, %v1105
        %v1165 = vsel %vm431, %v1157, %v1107
        %v1166 = vsel %vm431, %v1158, %v1109
        %v1167 = vsel %vm431, %v1159, %v1111
        %v1168 = vsel %vm440, %v1160, %v1129
        %v1169 = vsel %vm440, %v1161, %v1131
        %v1170 = vsel %vm440, %v1162, %v1133
        %v1171 = vsel %vm440, %v1163, %v1135
        %v1172 = vsel %vm440, %v1164, %v1137
        %v1173 = vsel %vm440, %v1165, %v1139
        %v1174 = vsel %vm440, %v1166, %v1141
        %v1175 = vsel %vm440, %v1167, %v1143
        %1176 = vst.msk [vmem:[%s183] sm:$0xff] %vm465, %v1168
        %1177 = vst.msk [vmem:[%s183 + $0x8] sm:$0xff] %vm465, %v1169
        %1178 = vst.msk [vmem:[%s183 + $0x10] sm:$0xff] %vm465, %v1170
        %1179 = vst.msk [vmem:[%s183 + $0x18] sm:$0xff] %vm465, %v1171
        %1180 = vst.msk [vmem:[%s183 + $0x20] sm:$0xff] %vm465, %v1172
        %1181 = vst.msk [vmem:[%s183 + $0x28] sm:$0xff] %vm465, %v1173
        %1182 = vst.msk [vmem:[%s183 + $0x30] sm:$0xff] %vm465, %v1174
        %1183 = vst.msk [vmem:[%s183 + $0x38] sm:$0xff] %vm465, %v1175
        %v1184 = vsel %vm465, %v1168, 0.0
        %v1185 = vsel %vm465, %v1169, 0.0
        %v1186 = vadd.f32 %v1184, %v1185
        %v1187 = vsel %vm465, %v1170, 0.0
        %v1188 = vadd.f32 %v1186, %v1187
        %v1189 = vsel %vm465, %v1171, 0.0
        %v1190 = vadd.f32 %v1188, %v1189
        %v1191 = vsel %vm465, %v1172, 0.0
        %v1192 = vadd.f32 %v1190, %v1191
        %v1193 = vsel %vm465, %v1173, 0.0
        %v1194 = vadd.f32 %v1192, %v1193
        %v1195 = vsel %vm465, %v1174, 0.0
        %v1196 = vadd.f32 %v1194, %v1195
        %v1197 = vsel %vm465, %v1175, 0.0
        %v1198 = vadd.f32 %v1196, %v1197
        %v1199 = vrot.slane %v1198, 4
        %v1200 = vadd.f32 %v1198, %v1199
        %v1201 = vrot.slane %v1200, 2
        %v1202 = vadd.f32 %v1200, %v1201
        %v1203 = vrot.slane %v1202, 1
        %v1204 = vadd.f32 %v1202, %v1203
        %v1205 = vmul.f32 %v1168, %v1168
        %v1206 = vmul.f32 %v1169, %v1169
        %v1207 = vmul.f32 %v1170, %v1170
        %v1208 = vmul.f32 %v1171, %v1171
        %v1209 = vmul.f32 %v1172, %v1172
        %v1210 = vmul.f32 %v1173, %v1173
        %v1211 = vmul.f32 %v1174, %v1174
        %v1212 = vmul.f32 %v1175, %v1175
        %v1213 = vsel %vm465, %v1205, 0.0
        %v1214 = vsel %vm465, %v1206, 0.0
        %v1215 = vadd.f32 %v1213, %v1214
        %v1216 = vsel %vm465, %v1207, 0.0
        %v1217 = vadd.f32 %v1215, %v1216
        %v1218 = vsel %vm465, %v1208, 0.0
        %v1219 = vadd.f32 %v1217, %v1218
        %v1220 = vsel %vm465, %v1209, 0.0
        %v1221 = vadd.f32 %v1219, %v1220
        %v1222 = vsel %vm465, %v1210, 0.0
        %v1223 = vadd.f32 %v1221, %v1222
        %v1224 = vsel %vm465, %v1211, 0.0
        %v1225 = vadd.f32 %v1223, %v1224
        %v1226 = vsel %vm465, %v1212, 0.0
        %v1227 = vadd.f32 %v1225, %v1226
        %v1228 = vrot.slane %v1227, 4
        %v1229 = vadd.f32 %v1227, %v1228
        %v1230 = vrot.slane %v1229, 2
        %v1231 = vadd.f32 %v1229, %v1230
        %v1232 = vrot.slane %v1231, 1
        %v1233 = vadd.f32 %v1231, %v1232
        %vm1234 = vcmask 1040384
        %v1235 = vsel %vm1234, %v1204, %v1233
        %vm1236 = vcmask 254976
        %1237 = vst.msk [vmem:[%s190] sm:$0x3] %vm1236, %v1235
        %s1238 = sand.u32 %s90, 1
        %s1239 = scalar_lea.sflag [#allocation3], %s1238
        %s1240 = sand.u32 %s90, 1
        %s1241 = smul.addr %s1240, 64
        %s1242 = scalar_lea.vmem [#allocation2], %s1241
        %s1243 = sand.u32 %s118, 1
        %s1244 = scalar_lea.sflag [#allocation5], %s1243
        %s1245 = sand.u32 %s118, 1
        %s1246 = smul.addr %s1245, 2
        %s1247 = scalar_lea.vmem [#allocation4], %s1246
        // Predicated region
        $region29: #{tpu_custom_call.1} parent=27 // pred_check
          %p1248 = pneg %p100
        $region30: #{tpu_custom_call.1} parent=27 // pred_check_branch
          %1250 = sbr.rel (%p1248) target = $region32
        $region31: #{tpu_custom_call.1} parent=27 // pred_region
          %s1251 = smul.u32 8, %s26
          %s1253 = ssub.s32 1024, 1024
          %1254 = vsyncadd %s1239, %s1253
          %s1255 = smul.addr %s25, 8
          %s1256 = sadd.s32 %s1251, %s1255
          %s1257 = smul.addr %s1256, 128
          %s1258 = scalar_lea.hbm %s2, %s1257
          %s1259 = sshll.u32 %s1242, 4
          %s1260 = int_to_ptr.vmem [resolvable:$true] %s1259
          %1265 = dma.vmem_to_hbm [thread:$0]  %s1260, 1024, %s1258, %s1239, 128, 128, 8
        $region32: #{tpu_custom_call.1} parent=27 // pred_fallthru
          _
        // Predicated region
        $region33: #{tpu_custom_call.1} parent=27 // pred_check
          %p1266 = pneg %p128
        $region34: #{tpu_custom_call.1} parent=27 // pred_check_branch
          %1268 = sbr.rel (%p1266) target = $region36
        $region35: #{tpu_custom_call.1} parent=27 // pred_region
          %s1270 = ssub.s32 32, 32
          %1271 = vsyncadd %s1244, %s1270
          %s1272 = sadd.s32 %s26, %s25
          %s1273 = smul.addr %s1272, 32
          %s1274 = scalar_lea.hbm %s3, %s1273
          %s1276 = sshll.u32 %s1247, 4
          %s1277 = int_to_ptr.vmem [resolvable:$true] %s1276
          %1279 = dma.vmem_to_hbm [thread:$0]  %s1277, 32, %s1274, %s1244
        $region36: #{tpu_custom_call.1} parent=27 // pred_fallthru
          _
      $region28: #{tpu_custom_call.1} parent=5 // pred_fallthru
        _
      %p1280 = scmp.le.s32.totalorder 2, %s16
      // Predicated region
      $region37: #{tpu_custom_call.1} parent=5 // pred_check
        %p1281 = pneg %p1280
      $region38: #{tpu_custom_call.1} parent=5 // pred_check_branch
        %1283 = sbr.rel (%p1281) target = $region40
      $region39: #{tpu_custom_call.1} parent=5 // pred_region
        %s1284 = ssub.s32 %s16, 2
        // Predicated region
        $region41: #{tpu_custom_call.1} parent=39 // pred_check
          %p1285 = pneg %p106
        $region42: #{tpu_custom_call.1} parent=39 // pred_check_branch
          %1287 = sbr.rel (%p1285) target = $region44
        $region43: #{tpu_custom_call.1} parent=39 // pred_region
          %s1288 = sand.u32 %s91, 1
          %s1289 = scalar_lea.sflag [#allocation3], %s1288
          %s1290 = sand.u32 %s91, 1
          %s1291 = smul.addr %s1290, 64
          %s1292 = scalar_lea.vmem [#allocation2], %s1291
          %1293 = dma.done %s1289, 1024
        $region44: #{tpu_custom_call.1} parent=39 // pred_fallthru
          _
        // Predicated region
        $region45: #{tpu_custom_call.1} parent=39 // pred_check
          %p1294 = pneg %p134
        $region46: #{tpu_custom_call.1} parent=39 // pred_check_branch
          %1296 = sbr.rel (%p1294) target = $region48
        $region47: #{tpu_custom_call.1} parent=39 // pred_region
          %s1297 = sand.u32 %s119, 1
          %s1298 = scalar_lea.sflag [#allocation5], %s1297
          %s1299 = sand.u32 %s119, 1
          %s1300 = smul.addr %s1299, 2
          %s1301 = scalar_lea.vmem [#allocation4], %s1300
          %1302 = dma.done %s1298, 32
        $region48: #{tpu_custom_call.1} parent=39 // pred_fallthru
          _
      $region40: #{tpu_custom_call.1} parent=5 // pred_fallthru
        _
    $region6: #{tpu_custom_call.1} parent=1 // loop_footer
      %s20 = sadd.s32 1, %s16
    $region7: #{tpu_custom_call.1} parent=1 // loop_footer_branch
      %15 = sbr.rel target = $region3
    $region8: #{tpu_custom_call.1} parent=1 // loop_exit
      _
    %1303 = vsyncpa [#allocation3], 1
    %s1304 = scalar_lea.sflag [#allocation3], 1
    %1305 = vsyncpa %s1304, 1
    %1306 = vsyncpa [#allocation5], 1
    %s1307 = scalar_lea.sflag [#allocation5], 1
    %1308 = vsyncpa %s1307, 1

</llo_original>
